<compile_context>
chip_gen: v7x
topology: tpu7x:2x2x1
jax: 0.10.0
libtpu: 0.0.40
codegen_flags: <defaults>
</compile_context>

<pallas_src>
import jax
import jax.numpy as jnp
from jax.experimental import pallas as pl
from jax.experimental.pallas import tpu as pltpu


def _relu_kernel(x_ref, o_ref):
    # ReLU: max(x, 0). Single VPU op per vreg; kernel is vld/vst + HBM bound.
    o_ref[...] = jnp.maximum(x_ref[...], 0)


def _round_up(a, b):
    return -(-a // b) * b


def relu_pallas(x):
    """ReLU forward: elementwise max(x, 0) on an array of any shape."""
    orig_shape = x.shape
    dtype = x.dtype
    size = int(x.size)
    if size == 0:
        return x

    itemsize = jnp.dtype(dtype).itemsize

    # Lane-dense layout: last dim is a large multiple of 128.
    LANE = 1024
    # Sublane multiple: 8 for 32-bit, 16 for 16-bit, 32 for 8-bit dtypes.
    sublane = max(8, 32 // itemsize)

    # ~4 MiB per block buffer (good on v7x, at/above the roofline knee on
    # v5e/v6e). 4 double-buffered blocks -> ~16 MiB VMEM.
    target_block_bytes = 4 * 1024 * 1024
    block_rows = (target_block_bytes // (LANE * itemsize)) // sublane * sublane
    block_rows = max(sublane, block_rows)

    # Rows needed to cover the flat array at LANE width (no block-multiple
    # padding -- Pallas masks the partial last block).
    rows = pl.cdiv(size, LANE)

    if rows <= sublane:
        # Tiny input: single block equal to the full array (exempt from the
        # (8,128) divisibility rule).
        block_rows = rows
    elif rows <= block_rows:
        # Small input: split into ~2 blocks so megacore "parallel" sharding
        # (v7x: 2 TensorCores) isn't wasted on a grid of 1.
        block_rows = max(sublane, _round_up(pl.cdiv(rows, 2), sublane))

    grid = (pl.cdiv(rows, block_rows),)

    padded_size = rows * LANE
    flat = jnp.ravel(x)
    needs_pad = padded_size != size
    if needs_pad:
        # Rare path (size not a multiple of 1024): pad < LANE elements.
        flat = jnp.pad(flat, (0, padded_size - size))
    x2d = flat.reshape(rows, LANE)

    out = pl.pallas_call(
        _relu_kernel,
        out_shape=jax.ShapeDtypeStruct((rows, LANE), dtype),
        grid_spec=pltpu.PrefetchScalarGridSpec(
            num_scalar_prefetch=0,
            grid=grid,
            in_specs=[pl.BlockSpec((block_rows, LANE), lambda i: (i, 0))],
            out_specs=pl.BlockSpec((block_rows, LANE), lambda i: (i, 0)),
        ),
        compiler_params=pltpu.CompilerParams(
            dimension_semantics=("parallel",),
            # 4 x ~4 MiB double-buffered blocks; well under 64 MiB v7x
            # physical VMEM and 128 MiB on v5e/v6e.
            vmem_limit_bytes=48 * 1024 * 1024,
        ),
        cost_estimate=pl.CostEstimate(
            flops=size,
            transcendentals=0,
            # Report the actual processed (padded) traffic.
            bytes_accessed=2 * padded_size * itemsize,
        ),
    )(x2d)

    if needs_pad:
        return out.reshape(-1)[:size].reshape(orig_shape)
    return out.reshape(orig_shape)


if __name__ == "__main__":
    key = jax.random.PRNGKey(0)
    # NCHW input, small shapes: batch=2, channels=4, spatial=16x16
    x = jax.random.normal(key, (2, 4, 16, 16), dtype=jnp.float32)

    y = relu_pallas(x)
    jax.block_until_ready(y)

    # sanity check against pure-JAX reference of the PyTorch forward
    y_ref = x * (x > 0)
    assert y.shape == x.shape
    assert y.dtype == x.dtype
    assert jnp.allclose(y, y_ref), "mismatch vs reference"

    print("KERNEL_OK")
</pallas_src>

<mosaic_0001>
module attributes {stable_mosaic.version = 11 : i64} {
  func.func @_relu_kernel(%arg0: i32, %arg1: memref<2x1024xf32, #tpu.memory_space<vmem>>, %arg2: memref<2x1024xf32, #tpu.memory_space<vmem>>) attributes {dimension_semantics = [#tpu.dimension_semantics<parallel>], iteration_bounds = array<i64: 1>, scalar_prefetch = 0 : i64, scratch_operands = 0 : i64, tpu.core_type = #tpu.core_type<tc>, window_params = [{transform_indices = @transform_0, window_bounds = array<i64: 2, 1024>}, {transform_indices = @transform_1, window_bounds = array<i64: 2, 1024>}]} {
    %c0 = arith.constant 0 : index
    %c0_0 = arith.constant 0 : index
    %0 = vector.load %arg1[%c0, %c0_0] : memref<2x1024xf32, #tpu.memory_space<vmem>>, vector<2x1024xf32>
    %cst = arith.constant 0.000000e+00 : f32
    %1 = vector.broadcast %cst : f32 to vector<2x1024xf32>
    %2 = arith.maximumf %0, %1 : vector<2x1024xf32>
    %c0_1 = arith.constant 0 : index
    %c0_2 = arith.constant 0 : index
    %3 = vector.load %arg2[%c0_1, %c0_2] : memref<2x1024xf32, #tpu.memory_space<vmem>>, vector<2x1024xf32>
    tpu.vector_store %arg2[%c0_1, %c0_2], %2 {strides = array<i32>} : memref<2x1024xf32, #tpu.memory_space<vmem>>, vector<2x1024xf32>,
    return
  }
  func.func @transform_0(%arg0: i32) -> (i32, i32) {
    %c0_i32 = arith.constant 0 : i32
    %c0_i32_0 = arith.constant 0 : i32
    return %arg0, %c0_i32 : i32, i32
  }
  func.func @transform_1(%arg0: i32) -> (i32, i32) {
    %c0_i32 = arith.constant 0 : i32
    %c0_i32_0 = arith.constant 0 : i32
    return %arg0, %c0_i32 : i32, i32
  }
}

</mosaic_0001>

<llo_original>
// kernel: tpu_custom_call.1
$region0: #{tpu_custom_call.1}
  #allocation0 [shape = 'u32[]', space=smem, size = 0x4, offset = 0x4, fixed_abs, tag = 'smem constant byte address 0x4 - core index']
  #allocation1 [shape = 'u32[144,128]{1,0:T(1,128)}', space=vmem, size = 0x12000, scoped, tag = 'internal scratch']
  %s0 = inlined_call_operand.hbm [shape: f32[2,1024], index: 0, kind: input, shape index: {}]
  %s1 = inlined_call_operand.hbm [shape: f32[2,1024], index: 1, kind: output, shape index: {}]
  %s2 = sld [smem:[#allocation0]]
  $region18: #{tpu_custom_call.1} parent=0
    _
  %s4 = ssub.s32 1, %s2
  %s5 = scalar_select 0, %s4, %s2
  $region1: #{tpu_custom_call.1} parent=0
    #allocation2 [shape = 'u8[8192]{0}', space=vmem, size = 0x2000, scoped, tag = 'input window, operand 0, single buffered']
    #allocation3 [shape = 's32[1]{0}', space=sflag, size = 0x4, scoped, tag = 'scoped memory for tpu_custom_call.1']
    #allocation4 [shape = 's32[1]{0}', space=sflag, size = 0x4, scoped, tag = 'scoped memory for tpu_custom_call.1']
    #allocation5 [shape = 'u8[8192]{0}', space=vmem, size = 0x2000, scoped, tag = 'output window, operand 0, single buffered']
    %6 = vsyncpa [#allocation3], 0
    %7 = vsyncpa [#allocation4], 0
    // Predicated region
    $region2: #{tpu_custom_call.1} parent=1 // pred_check
      _
    $region3: #{tpu_custom_call.1} parent=1 // pred_check_branch
      %9 = sbr.rel (0) target = $region5
    $region4: #{tpu_custom_call.1} parent=1 // pred_region
      %s11 = ssub.s32 256, 256
      %12 = vsyncadd [#allocation3], %s11
      %s14 = sshll.u32 [#allocation2], 4
      %s15 = int_to_ptr.vmem [resolvable:$true] %s14
      %17 = dma.hbm_to_vmem [thread:$0]  %s0, 256, %s15, [#allocation3]
    $region5: #{tpu_custom_call.1} parent=1 // pred_fallthru
      _
    // Predicated region
    $region6: #{tpu_custom_call.1} parent=1 // pred_check
      _
    $region7: #{tpu_custom_call.1} parent=1 // pred_check_branch
      %19 = sbr.rel (0) target = $region9
    $region8: #{tpu_custom_call.1} parent=1 // pred_region
      %20 = dma.done [#allocation3], 256
    $region9: #{tpu_custom_call.1} parent=1 // pred_fallthru
      _
    %v21 = vld [vmem:[#allocation2] sm:$0xff]
    %v22 = vld [vmem:[#allocation2 + $0x8] sm:$0xff]
    %v23 = vmax.f32 %v21, 0.0
    %v24 = vmax.f32 %v22, 0.0
    %25 = vst [vmem:[#allocation5] sm:$0xff] %v23
    %26 = vst [vmem:[#allocation5 + $0x8] sm:$0xff] %v24
    // Predicated region
    $region10: #{tpu_custom_call.1} parent=1 // pred_check
      _
    $region11: #{tpu_custom_call.1} parent=1 // pred_check_branch
      %28 = sbr.rel (0) target = $region13
    $region12: #{tpu_custom_call.1} parent=1 // pred_region
      %s30 = ssub.s32 256, 256
      %31 = vsyncadd [#allocation4], %s30
      %s33 = sshll.u32 [#allocation5], 4
      %s34 = int_to_ptr.vmem [resolvable:$true] %s33
      %36 = dma.vmem_to_hbm [thread:$0]  %s34, 256, %s1, [#allocation4]
    $region13: #{tpu_custom_call.1} parent=1 // pred_fallthru
      _
    // Predicated region
    $region14: #{tpu_custom_call.1} parent=1 // pred_check
      _
    $region15: #{tpu_custom_call.1} parent=1 // pred_check_branch
      %38 = sbr.rel (0) target = $region17
    $region16: #{tpu_custom_call.1} parent=1 // pred_region
      %39 = dma.done [#allocation4], 256
    $region17: #{tpu_custom_call.1} parent=1 // pred_fallthru
      _
    %40 = vsyncpa [#allocation3], 1
    %41 = vsyncpa [#allocation4], 1

</llo_original>
